<compile_context>
chip_gen: v5e
topology: v5e:2x2
jax: 0.10.0
libtpu: 0.0.40
codegen_flags: <defaults>
</compile_context>

<pallas_src>
import math

import jax
import jax.numpy as jnp
import numpy as np
from jax import lax
from jax.experimental import pallas as pl
from jax.experimental.pallas import tpu as pltpu


# -----------------------------------------------------------------------------
# Host-side helpers (shared by the kernel parameters and the reference check).
# -----------------------------------------------------------------------------
def _division_term(embedding_dimention: int) -> np.ndarray:
    """exp(arange(0, D, 2) * -ln(10000)/D), float32 -- same math as PyTorch."""
    return np.exp(
        np.arange(0, embedding_dimention, 2, dtype=np.float32)
        * np.float32(-math.log(10000.0) / embedding_dimention)
    ).astype(np.float32)


def build_pos_encoding(max_len: int, embedding_dimention: int) -> np.ndarray:
    """Reference PE table (max_len, D) float32 -- used for the host-side check."""
    pos = np.arange(max_len, dtype=np.float32)[:, None]
    div = _division_term(embedding_dimention)[None, :]
    pe = np.zeros((max_len, embedding_dimention), dtype=np.float32)
    pe[:, 0::2] = np.sin(pos * div)
    pe[:, 1::2] = np.cos(pos * div)
    return pe


# -----------------------------------------------------------------------------
# Layout / tile selection.
# -----------------------------------------------------------------------------
def _pick_lane_width(S: int, B: int, D: int, max_lanes: int = 4096) -> int:
    """Lane width L of the flattened (R, L) slab.

    Constraints (so the per-element (seq, dim) indices decompose into a
    per-row part plus a compile-time per-lane part, no in-kernel div/mod):
      L divides S*B*D,  L % D == 0,  and (L % (B*D) == 0 or (B*D) % L == 0).
    Preference: the largest multiple of 128 satisfying them (unmasked stores).
    """
    total, BD = S * B * D, B * D

    def ok(L):
        return total % L == 0 and L % D == 0 and (L % BD == 0 or BD % L == 0)

    best = None
    for m in range(1, max(1, max_lanes // D) + 1):
        L = m * D
        if L % 128 == 0 and ok(L):
            best = L
    if best is None:
        # Correct fallback; may use masked stores if neither is lane-dense.
        best = D if D % 128 == 0 else BD
    return best


def _vmem_tile_budget_bytes() -> int:
    """Conservative budget for the double-buffered x/out tiles."""
    try:
        phys = pltpu.get_tpu_info().vmem_capacity_bytes  # generation-aware
    except Exception:
        phys = 64 * 1024 * 1024                          # v7x lower bound
    return min(phys // 3, 24 * 1024 * 1024)


def _pick_row_tile(R: int, L: int, itemsize: int) -> int:
    """Rows per grid step: as large as the VMEM budget allows (multiple of 8)."""
    budget = _vmem_tile_budget_bytes()
    row_bytes = max(1, L * itemsize)
    max_rows = max(1, budget // (4 * row_bytes))  # x + out, double-buffered
    tr = min(R, 2048, max_rows)
    if tr >= R:
        if R >= 16:
            # Enough work: split into >=2 grid steps so v7x's two TensorCores
            # both get tiles along the "parallel" axis.
            return max(8, (R // 2 // 8) * 8)
        return R                                   # tiny input: single tile
    return min(R, max(8, (tr // 8) * 8))


# -----------------------------------------------------------------------------
# Kernel.
# -----------------------------------------------------------------------------
# murmur3 fmix32 / golden-ratio constants, pre-wrapped to the signed int32 range.
_GOLDEN = -1640531527   # 0x9E3779B9
_MIX1 = -2048144789     # 0x85EBCA6B
_MIX2 = -1028477387     # 0xC2B2AE35


def _make_kernel(L: int, dropout_p: float):
    p = float(dropout_p)
    apply_dropout = p > 0.0
    keep_scale = 1.0 / (1.0 - p) if p < 1.0 else 0.0      # plain Python float
    # drop iff hash31 < thresh31  ->  keep probability = 1 - p
    thresh31 = min(int(round(p * float(2 ** 31))), 2 ** 31 - 1)

    def kernel(seed_ref, x_ref, scol_ref, soff_ref, freq_ref, sel_ref, o_ref):
        tr = x_ref.shape[0]
        # --- positional encoding regenerated on the fly (no PE HBM stream) ---
        pos = scol_ref[...] + soff_ref[...]          # (tr,1)+(1,L) -> (tr,L) f32
        ang = pos * freq_ref[...]
        pe = jnp.where(sel_ref[...] > 0.5, jnp.cos(ang), jnp.sin(ang))
        y = x_ref[...] + pe.astype(x_ref.dtype)      # native-dtype add

        if apply_dropout:
            # Counter-based RNG: murmur3 finalizer of the GLOBAL flat element
            # index mixed with the SMEM seed.  Zero HBM mask traffic; mask is
            # identical under any tiling (no per-tile seed-reuse pitfall).
            rows = (lax.broadcasted_iota(jnp.int32, (tr, L), 0)
                    + pl.program_id(0) * tr)
            lanes = lax.broadcasted_iota(jnp.int32, (tr, L), 1)
            h = rows * L + lanes
            h = h ^ (seed_ref[0] * _GOLDEN)
            h = h ^ lax.shift_right_logical(h, np.int32(16))
            h = h * _MIX1
            h = h ^ lax.shift_right_logical(h, np.int32(13))
            h = h * _MIX2
            h = h ^ lax.shift_right_logical(h, np.int32(16))
            bits31 = h & 0x7FFFFFFF                  # 31 uniform bits, signed-safe
            keep = bits31 >= thresh31
            y = jnp.where(keep, y * keep_scale, 0.0)

        o_ref[...] = y.astype(o_ref.dtype)

    return kernel


# -----------------------------------------------------------------------------
# Wrapper.
# -----------------------------------------------------------------------------
def positional_encoding_forward(token_embedding: jnp.ndarray,
                                dropout_p: float,
                                *,
                                max_len: int | None = None,
                                seed: int = 0) -> jnp.ndarray:
    """dropout(token_embedding + PE[:S]); token_embedding: (S, B, D)."""
    S, B, D = token_embedding.shape
    assert D % 2 == 0, "embedding_dimention must be even"
    if max_len is not None:
        assert S <= max_len, "sequence longer than max_len"

    total, BD = S * B * D, B * D
    L = _pick_lane_width(S, B, D)
    R = total // L
    x_slab = token_embedding.reshape(R, L)           # contiguous -> free reshape

    # Tiny host-side parameter arrays for in-kernel PE generation.
    lane = np.arange(L)
    d_of_lane = lane % D
    div = _division_term(D)
    freq_row = div[d_of_lane // 2].reshape(1, L).astype(np.float32)
    sel_row = (d_of_lane % 2).astype(np.float32).reshape(1, L)   # 1 -> cos lane
    if L % BD == 0:          # several sequence positions per slab row
        s_col = (np.arange(R, dtype=np.float32) * (L // BD)).reshape(R, 1)
        s_off = (lane // BD).astype(np.float32).reshape(1, L)
    else:                    # several slab rows per sequence position
        s_col = (np.arange(R) // (BD // L)).astype(np.float32).reshape(R, 1)
        s_off = np.zeros((1, L), dtype=np.float32)

    itemsize = jnp.dtype(token_embedding.dtype).itemsize
    tr = _pick_row_tile(R, L, itemsize)
    grid = (pl.cdiv(R, tr),)

    # index_maps receive the scalar-prefetch ref (seed) as a trailing arg.
    slab_spec = pl.BlockSpec((tr, L), lambda i, seed_ref: (i, 0))
    col_spec = pl.BlockSpec((tr, 1), lambda i, seed_ref: (i, 0))
    row_spec = pl.BlockSpec((1, L), lambda i, seed_ref: (0, 0))
    out_spec = pl.BlockSpec((tr, L), lambda i, seed_ref: (i, 0))

    out_slab = pl.pallas_call(
        _make_kernel(L, dropout_p),
        out_shape=jax.ShapeDtypeStruct((R, L), token_embedding.dtype),
        grid_spec=pltpu.PrefetchScalarGridSpec(
            num_scalar_prefetch=1,
            grid=grid,
            in_specs=[slab_spec, col_spec, row_spec, row_spec, row_spec],
            out_specs=out_spec,
        ),
        # Operand 0 is the prefetched seed, operand 1 is the x slab: alias it
        # with the same-shape/same-dtype output (no second HBM buffer under
        # jit with donation).
        input_output_aliases={1: 0},
        compiler_params=pltpu.CompilerParams(
            dimension_semantics=("parallel",),       # shard row tiles across TCs
            vmem_limit_bytes=32 * 1024 * 1024,
        ),
    )(
        jnp.asarray([seed], dtype=jnp.int32),
        x_slab,
        jnp.asarray(s_col),
        jnp.asarray(s_off),
        jnp.asarray(freq_row),
        jnp.asarray(sel_row),
    )
    return out_slab.reshape(S, B, D)


if __name__ == "__main__":
    # Small shapes implied by the module: seq=8, batch=2, embed_dim=32.
    embedding_dimention = 32
    dropout_p = 0.1
    max_len = 16
    seq_len, batch = 8, 2

    key = jax.random.PRNGKey(0)
    x = jax.random.normal(key, (seq_len, batch, embedding_dimention),
                          dtype=jnp.float32)

    # Training-mode forward (dropout active).
    out = positional_encoding_forward(x, dropout_p, max_len=max_len, seed=1234)
    out = jax.block_until_ready(out)

    # Reference: x + PE broadcast over batch (PyTorch eval-mode output).
    pe_ref = build_pos_encoding(max_len, embedding_dimention)[:seq_len]
    ref = np.asarray(x) + pe_ref[:, None, :]

    # 1) Eval mode (p = 0) must reproduce x + PE.
    out_eval = jax.block_until_ready(
        positional_encoding_forward(x, 0.0, max_len=max_len))
    np.testing.assert_allclose(np.asarray(out_eval), ref, rtol=1e-5, atol=1e-5)

    # 2) Train mode: every element is either 0 (dropped) or (x+PE)/(1-p) (kept).
    out_np = np.asarray(out)
    scaled = ref / (1.0 - dropout_p)
    is_zero = np.isclose(out_np, 0.0, atol=1e-6)
    is_scaled = np.isclose(out_np, scaled, rtol=1e-5, atol=1e-5)
    assert bool(np.all(is_zero | is_scaled)), \
        "dropout output has values that are neither 0 nor scaled x+PE"
    drop_frac = float(np.mean(is_zero & ~is_scaled))
    assert 0.0 < drop_frac < 0.5, f"implausible dropout rate {drop_frac}"

    print("KERNEL_OK")
</pallas_src>

<mosaic_0001>
module attributes {stable_mosaic.version = 11 : i64} {
  func.func @kernel(%arg0: i32, %arg1: memref<1xi32, #tpu.memory_space<smem>>, %arg2: memref<1x512xf32, #tpu.memory_space<vmem>>, %arg3: memref<1x1xf32, #tpu.memory_space<vmem>>, %arg4: memref<1x512xf32, #tpu.memory_space<vmem>>, %arg5: memref<1x512xf32, #tpu.memory_space<vmem>>, %arg6: memref<1x512xf32, #tpu.memory_space<vmem>>, %arg7: memref<1x512xf32, #tpu.memory_space<vmem>>) attributes {dimension_semantics = [#tpu.dimension_semantics<parallel>], iteration_bounds = array<i64: 1>, scalar_prefetch = 1 : i64, scratch_operands = 0 : i64, tpu.core_type = #tpu.core_type<tc>, window_params = [{transform_indices = @transform_0, window_bounds = array<i64: 1, 512>}, {transform_indices = @transform_1, window_bounds = array<i64: 1, 1>}, {pipeline_mode = #tpu.pipeline_mode<synchronous>, transform_indices = @transform_2, window_bounds = array<i64: 1, 512>}, {pipeline_mode = #tpu.pipeline_mode<synchronous>, transform_indices = @transform_3, window_bounds = array<i64: 1, 512>}, {pipeline_mode = #tpu.pipeline_mode<synchronous>, transform_indices = @transform_4, window_bounds = array<i64: 1, 512>}, {transform_indices = @transform_5, window_bounds = array<i64: 1, 512>}]} {
    %c0 = arith.constant 0 : index
    %c0_0 = arith.constant 0 : index
    %0 = vector.load %arg3[%c0, %c0_0] : memref<1x1xf32, #tpu.memory_space<vmem>>, vector<1x1xf32>
    %c0_1 = arith.constant 0 : index
    %c0_2 = arith.constant 0 : index
    %1 = vector.load %arg4[%c0_1, %c0_2] : memref<1x512xf32, #tpu.memory_space<vmem>>, vector<1x512xf32>
    %2 = vector.broadcast %0 : vector<1x1xf32> to vector<1x512xf32>
    %3 = arith.addf %2, %1 : vector<1x512xf32>
    %c0_3 = arith.constant 0 : index
    %c0_4 = arith.constant 0 : index
    %4 = vector.load %arg5[%c0_3, %c0_4] : memref<1x512xf32, #tpu.memory_space<vmem>>, vector<1x512xf32>
    %5 = arith.mulf %3, %4 : vector<1x512xf32>
    %c0_5 = arith.constant 0 : index
    %c0_6 = arith.constant 0 : index
    %6 = vector.load %arg6[%c0_5, %c0_6] : memref<1x512xf32, #tpu.memory_space<vmem>>, vector<1x512xf32>
    %cst = arith.constant 5.000000e-01 : f32
    %7 = vector.broadcast %cst : f32 to vector<1x512xf32>
    %8 = arith.cmpf ogt, %6, %7 : vector<1x512xf32>
    %9 = math.cos %5 : vector<1x512xf32>
    %10 = math.sin %5 : vector<1x512xf32>
    %11 = arith.select %8, %9, %10 : vector<1x512xi1>, vector<1x512xf32>
    %c0_7 = arith.constant 0 : index
    %c0_8 = arith.constant 0 : index
    %12 = vector.load %arg2[%c0_7, %c0_8] : memref<1x512xf32, #tpu.memory_space<vmem>>, vector<1x512xf32>
    %13 = arith.addf %12, %11 : vector<1x512xf32>
    %14 = tpu.iota {dimensions = array<i32: 0>} : vector<1x512xi32>
    %c1_i32 = arith.constant 1 : i32
    %15 = arith.muli %arg0, %c1_i32 : i32
    %16 = vector.broadcast %15 : i32 to vector<1x512xi32>
    %17 = arith.addi %14, %16 : vector<1x512xi32>
    %18 = tpu.iota {dimensions = array<i32: 1>} : vector<1x512xi32>
    %c512_i32 = arith.constant 512 : i32
    %19 = vector.broadcast %c512_i32 : i32 to vector<1x512xi32>
    %20 = arith.muli %17, %19 : vector<1x512xi32>
    %21 = arith.addi %20, %18 : vector<1x512xi32>
    %c0_9 = arith.constant 0 : index
    %22 = memref.load %arg1[%c0_9] : memref<1xi32, #tpu.memory_space<smem>>
    %c-1640531527_i32 = arith.constant -1640531527 : i32
    %23 = arith.muli %22, %c-1640531527_i32 : i32
    %24 = vector.broadcast %23 : i32 to vector<1x512xi32>
    %25 = arith.xori %21, %24 : vector<1x512xi32>
    %c16_i32 = arith.constant 16 : i32
    %26 = vector.broadcast %c16_i32 : i32 to vector<1x512xi32>
    %27 = arith.shrui %25, %26 : vector<1x512xi32>
    %28 = arith.xori %25, %27 : vector<1x512xi32>
    %c-2048144789_i32 = arith.constant -2048144789 : i32
    %29 = vector.broadcast %c-2048144789_i32 : i32 to vector<1x512xi32>
    %30 = arith.muli %28, %29 : vector<1x512xi32>
    %c13_i32 = arith.constant 13 : i32
    %31 = vector.broadcast %c13_i32 : i32 to vector<1x512xi32>
    %32 = arith.shrui %30, %31 : vector<1x512xi32>
    %33 = arith.xori %30, %32 : vector<1x512xi32>
    %c-1028477387_i32 = arith.constant -1028477387 : i32
    %34 = vector.broadcast %c-1028477387_i32 : i32 to vector<1x512xi32>
    %35 = arith.muli %33, %34 : vector<1x512xi32>
    %c16_i32_10 = arith.constant 16 : i32
    %36 = vector.broadcast %c16_i32_10 : i32 to vector<1x512xi32>
    %37 = arith.shrui %35, %36 : vector<1x512xi32>
    %38 = arith.xori %35, %37 : vector<1x512xi32>
    %c2147483647_i32 = arith.constant 2147483647 : i32
    %39 = vector.broadcast %c2147483647_i32 : i32 to vector<1x512xi32>
    %40 = arith.andi %38, %39 : vector<1x512xi32>
    %c214748365_i32 = arith.constant 214748365 : i32
    %41 = vector.broadcast %c214748365_i32 : i32 to vector<1x512xi32>
    %42 = arith.cmpi sge, %40, %41 : vector<1x512xi32>
    %cst_11 = arith.constant 1.11111116 : f32
    %43 = vector.broadcast %cst_11 : f32 to vector<1x512xf32>
    %44 = arith.mulf %13, %43 : vector<1x512xf32>
    %cst_12 = arith.constant 0.000000e+00 : f32
    %45 = vector.broadcast %cst_12 : f32 to vector<1x512xf32>
    %46 = arith.select %42, %44, %45 : vector<1x512xi1>, vector<1x512xf32>
    %c0_13 = arith.constant 0 : index
    %c0_14 = arith.constant 0 : index
    %47 = vector.load %arg7[%c0_13, %c0_14] : memref<1x512xf32, #tpu.memory_space<vmem>>, vector<1x512xf32>
    tpu.vector_store %arg7[%c0_13, %c0_14], %46 {strides = array<i32>} : memref<1x512xf32, #tpu.memory_space<vmem>>, vector<1x512xf32>,
    return
  }
  func.func @transform_0(%arg0: i32, %arg1: memref<1xi32, #tpu.memory_space<smem>>) -> (i32, i32) {
    %c0_i32 = arith.constant 0 : i32
    %c0_i32_0 = arith.constant 0 : i32
    return %arg0, %c0_i32 : i32, i32
  }
  func.func @transform_1(%arg0: i32, %arg1: memref<1xi32, #tpu.memory_space<smem>>) -> (i32, i32) {
    %c0_i32 = arith.constant 0 : i32
    %c0_i32_0 = arith.constant 0 : i32
    return %arg0, %c0_i32 : i32, i32
  }
  func.func @transform_2(%arg0: i32, %arg1: memref<1xi32, #tpu.memory_space<smem>>) -> (i32, i32) {
    %c0_i32 = arith.constant 0 : i32
    %c0_i32_0 = arith.constant 0 : i32
    %c0_i32_1 = arith.constant 0 : i32
    return %c0_i32, %c0_i32_0 : i32, i32
  }
  func.func @transform_3(%arg0: i32, %arg1: memref<1xi32, #tpu.memory_space<smem>>) -> (i32, i32) {
    %c0_i32 = arith.constant 0 : i32
    %c0_i32_0 = arith.constant 0 : i32
    %c0_i32_1 = arith.constant 0 : i32
    return %c0_i32, %c0_i32_0 : i32, i32
  }
  func.func @transform_4(%arg0: i32, %arg1: memref<1xi32, #tpu.memory_space<smem>>) -> (i32, i32) {
    %c0_i32 = arith.constant 0 : i32
    %c0_i32_0 = arith.constant 0 : i32
    %c0_i32_1 = arith.constant 0 : i32
    return %c0_i32, %c0_i32_0 : i32, i32
  }
  func.func @transform_5(%arg0: i32, %arg1: memref<1xi32, #tpu.memory_space<smem>>) -> (i32, i32) {
    %c0_i32 = arith.constant 0 : i32
    %c0_i32_0 = arith.constant 0 : i32
    return %arg0, %c0_i32 : i32, i32
  }
}

</mosaic_0001>

<llo_original>
// kernel: tpu_custom_call.1
$region0: #{tpu_custom_call.1}
  #allocation0 [shape = 'u32[]', space=smem, size = 0x4, offset = 0x4, fixed_abs, tag = 'smem constant byte address 0x4 - core index']
  #allocation1 [shape = 'u32[72,128]{1,0:T(1,128)}', space=vmem, size = 0x9000, scoped, tag = 'internal scratch']
  #allocation2 [shape = 's32[1]{0}', space=sflag, size = 0x4, scoped, tag = 'scoped memory for tpu_custom_call.1']
  #allocation3 [shape = 's32[1]{0:T(128)S(6)}', space=smem, size = 0x200, scoped, tag = 'prefetched SMEM operand 0']
  #allocation4 [shape = 'f32[1,1]{1,0:T(1,128)S(1)}', space=vmem, size = 0x200, scoped, tag = 'scoped memory for tpu_custom_call.1']
  %s0 = inlined_call_operand.<no memory space> [shape: s32[1], index: 0, kind: input, shape index: {}]
  %s1 = inlined_call_operand.hbm [shape: f32[1,512], index: 1, kind: input, shape index: {}, may-alias: {1,6}]
  %s2 = inlined_call_operand.<no memory space> [shape: f32[1,1], index: 2, kind: input, shape index: {}]
  %s3 = inlined_call_operand.vmem [shape: f32[1,512], index: 3, kind: input, shape index: {}]
  %s4 = inlined_call_operand.vmem [shape: f32[1,512], index: 4, kind: input, shape index: {}]
  %s5 = inlined_call_operand.vmem [shape: f32[1,512], index: 5, kind: input, shape index: {}]
  %s6 = inlined_call_operand.hbm [shape: f32[1,512], index: 6, kind: output, shape index: {}, may-alias: {1,6}]
  %s7 = sld [smem:[#allocation0]]
  $region34: #{tpu_custom_call.1} parent=0
    _
  %s9 = ssub.s32 1, %s7
  %s10 = scalar_select 0, %s9, %s7
  %11 = sst [smem:[#allocation3]] %s0
  %v12 = vstv %s2
  %13 = vst [vmem:[#allocation4] sm:$0x1] %v12
  $region1: #{tpu_custom_call.1} parent=0
    #allocation5 [shape = 'u8[2048]{0}', space=vmem, size = 0x800, scoped, tag = 'input window, operand 1, single buffered']
    #allocation6 [shape = 's32[1]{0}', space=sflag, size = 0x4, scoped, tag = 'scoped memory for tpu_custom_call.1']
    #allocation7 [shape = 's32[1]{0}', space=sflag, size = 0x4, scoped, tag = 'scoped memory for tpu_custom_call.1']
    #allocation8 [shape = 'u8[2048]{0}', space=vmem, size = 0x800, scoped, tag = 'output window, operand 0, single buffered']
    %14 = vsyncpa [#allocation6], 0
    %15 = vsyncpa [#allocation7], 0
    // Predicated region
    $region2: #{tpu_custom_call.1} parent=1 // pred_check
      _
    $region3: #{tpu_custom_call.1} parent=1 // pred_check_branch
      %17 = sbr.rel (0) target = $region5
    $region4: #{tpu_custom_call.1} parent=1 // pred_region
      %19 = vsyncadd [#allocation6], 0
      %s21 = sshll.u32 %s1, 4
      %s22 = int_to_ptr.hbm [resolvable:$true] %s21
      %s23 = sshll.u32 [#allocation5], 4
      %s24 = int_to_ptr.vmem [resolvable:$true] %s23
      %26 = dma.hbm_to_vmem [thread:$0]  %s22, 64, %s24, [#allocation6]
    $region5: #{tpu_custom_call.1} parent=1 // pred_fallthru
      _
    // Predicated region
    $region6: #{tpu_custom_call.1} parent=1 // pred_check
      _
    $region7: #{tpu_custom_call.1} parent=1 // pred_check_branch
      %28 = sbr.rel (0) target = $region9
    $region8: #{tpu_custom_call.1} parent=1 // pred_region
      _
    $region9: #{tpu_custom_call.1} parent=1 // pred_fallthru
      _
    // Predicated region
    $region10: #{tpu_custom_call.1} parent=1 // pred_check
      _
    $region11: #{tpu_custom_call.1} parent=1 // pred_check_branch
      %30 = sbr.rel (0) target = $region13
    $region12: #{tpu_custom_call.1} parent=1 // pred_region
      _
    $region13: #{tpu_custom_call.1} parent=1 // pred_fallthru
      _
    // Predicated region
    $region14: #{tpu_custom_call.1} parent=1 // pred_check
      _
    $region15: #{tpu_custom_call.1} parent=1 // pred_check_branch
      %32 = sbr.rel (0) target = $region17
    $region16: #{tpu_custom_call.1} parent=1 // pred_region
      _
    $region17: #{tpu_custom_call.1} parent=1 // pred_fallthru
      _
    // Predicated region
    $region18: #{tpu_custom_call.1} parent=1 // pred_check
      _
    $region19: #{tpu_custom_call.1} parent=1 // pred_check_branch
      %34 = sbr.rel (0) target = $region21
    $region20: #{tpu_custom_call.1} parent=1 // pred_region
      _
    $region21: #{tpu_custom_call.1} parent=1 // pred_fallthru
      _
    // Predicated region
    $region22: #{tpu_custom_call.1} parent=1 // pred_check
      _
    $region23: #{tpu_custom_call.1} parent=1 // pred_check_branch
      %36 = sbr.rel (0) target = $region25
    $region24: #{tpu_custom_call.1} parent=1 // pred_region
      %38 = dma.done [#allocation6], 64
    $region25: #{tpu_custom_call.1} parent=1 // pred_fallthru
      _
    %v39 = vld [vmem:[#allocation4] sm:$0x1]
    %v40 = vld [vmem:[%s3] sm:$0xf]
    %42 = vset.pattern.permute.xlu0 0
    %43 = vperm.xlu0 %42, %v39
    %v44 = vpop.permute.xlu0 %43
    %v46 = vperm.slane %v44, 0
    %v47 = vadd.f32 %v46, %v40
    %v48 = vld [vmem:[%s4] sm:$0xf]
    %v49 = vmul.f32 %v47, %v48
    %v50 = vld [vmem:[%s5] sm:$0xf]
    %vm51 = vcmp.gt.f32.partialorder %v50, 0.5
    %v52 = vand.u32 2147483647, %v49
    %vm53 = vcmp.le.f32.partialorder %v52, 0.7853982
    %vm54 = vcmp.lt.s32.totalorder %v49, 0
    %v55 = vand.u32 %v49, 2139095040
    %v56 = vshrl.u32 %v55, 23
    %v57 = vsub.s32 %v56, 127
    %v58 = vand.u32 2147483647, %v49
    %v59 = vand.u32 %v58, 8388607
    %v60 = vor.u32 %v59, 8388608
    %v61 = vsub.s32 0, %v60
    %v62 = vadd.s32 %v57, 1
    %vm63 = vcmp.gt.s32.totalorder %v62, 0
    %v64 = vsel %vm63, %v62, 0
    %v65 = vshrl.u32 %v64, 5
    %v66 = vand.u32 %v64, 31
    %v67 = vsub.s32 32, %v66
    %v68 = vshrl.u32 683565275, %v67
    %v69 = vshll.u32 683565275, %v66
    %v70 = vshrl.u32 2475754826, %v67
    %v71 = vor.u32 %v69, %v70
    %v72 = vshll.u32 2475754826, %v66
    %v73 = vshrl.u32 2131351028, %v67
    %v74 = vor.u32 %v72, %v73
    %v75 = vshll.u32 2131351028, %v66
    %v76 = vshrl.u32 2102212464, %v67
    %v77 = vor.u32 %v75, %v76
    %v78 = vshll.u32 2102212464, %v66
    %v79 = vshrl.u32 920167782, %v67
    %v80 = vor.u32 %v78, %v79
    %v81 = vshll.u32 920167782, %v66
    %v82 = vshrl.u32 1326507024, %v67
    %v83 = vor.u32 %v81, %v82
    %vm84 = vcmp.lt.s32.totalorder %v65, 1
    %vm85 = vcmp.lt.s32.totalorder %v65, 2
    %vm86 = vcmp.lt.s32.totalorder %v65, 3
    %vm87 = vcmp.lt.s32.totalorder %v65, 4
    %v88 = vsel %vm84, %v68, %v71
    %v89 = vsel %vm87, %v77, 2102212464
    %v90 = vsel %vm86, %v74, %v89
    %v91 = vsel %vm85, %v88, %v90
    %v92 = vsel %vm84, %v71, %v74
    %v93 = vsel %vm87, %v80, 920167782
    %v94 = vsel %vm86, %v77, %v93
    %v95 = vsel %vm85, %v92, %v94
    %v96 = vsel %vm84, %v74, %v77
    %v97 = vsel %vm87, %v83, 1326507024
    %v98 = vsel %vm86, %v80, %v97
    %v99 = vsel %vm85, %v96, %v98
    %v100 = vshll.u32 %v60, 8
    %v101 = vand.u32 %v100, 65535
    %v102 = vshrl.u32 %v100, 16
    %v103 = vand.u32 %v99, 65535
    %v104 = vshrl.u32 %v99, 16
    %v105 = vmul.u32 %v101, %v103
    %v106 = vmul.u32 %v101, %v104
    %v107 = vmul.u32 %v102, %v103
    %v108 = vmul.u32 %v102, %v104
    %v109 = vshll.u32 %v106, 16
    %v110 = vshrl.u32 %v106, 16
    %v111 = vshll.u32 %v107, 16
    %v112 = vshrl.u32 %v107, 16
    %vm113 = vc.u32 %v105, %v109
    %v114 = vsel %vm113, 1, 0
    %v115 = vadd.s32 %v105, %v109
    %v116 = vadd.s32 %v108, %v114
    %vm117 = vc.u32 %v115, %v111
    %v118 = vsel %vm117, 1, 0
    %v119 = vadd.s32 %v115, %v111
    %v120 = vadd.s32 %v116, %v118
    %v121 = vadd.s32 %v120, %v110
    %v122 = vadd.s32 %v121, %v112
    %v123 = vand.u32 %v100, 65535
    %v124 = vshrl.u32 %v100, 16
    %v125 = vand.u32 %v95, 65535
    %v126 = vshrl.u32 %v95, 16
    %v127 = vmul.u32 %v123, %v125
    %v128 = vmul.u32 %v123, %v126
    %v129 = vmul.u32 %v124, %v125
    %v130 = vmul.u32 %v124, %v126
    %v131 = vshll.u32 %v128, 16
    %v132 = vshrl.u32 %v128, 16
    %v133 = vshll.u32 %v129, 16
    %v134 = vshrl.u32 %v129, 16
    %vm135 = vc.u32 %v127, %v131
    %v136 = vsel %vm135, 1, 0
    %v137 = vadd.s32 %v127, %v131
    %v138 = vadd.s32 %v130, %v136
    %vm139 = vc.u32 %v137, %v133
    %v140 = vsel %vm139, 1, 0
    %v141 = vadd.s32 %v137, %v133
    %v142 = vadd.s32 %v138, %v140
    %v143 = vadd.s32 %v142, %v132
    %v144 = vadd.s32 %v143, %v134
    %v145 = vmul.u32 %v100, %v91
    %v146 = vadd.s32 %v122, %v141
    %vm147 = vc.u32 %v122, %v141
    %v148 = vadd.s32 %v144, 1
    %v149 = vsel %vm147, %v148, %v144
    %v150 = vadd.s32 %v145, %v149
    %v151 = vadd.s32 %v150, 536870912
    %v152 = vshrl.u32 %v151, 30
    %v153 = vshll.u32 %v152, 30
    %v154 = vsub.s32 %v150, %v153
    %vm155 = vcmp.lt.s32.totalorder %v154, 0
    %v156 = vsub.s32 0, %v154
    %v157 = vsel %vm155, %v156, %v154
    %v158 = vclz %v157
    %v159 = vsub.s32 %v158, 2
    %vm160 = vcmp.gt.s32.totalorder 0, %v159
    %v161 = vsel %vm160, 0, %v159
    %v162 = vsub.s32 32, %v161
    %v163 = vshll.u32 %v154, %v161
    %v164 = vshrl.u32 %v146, %v162
    %v165 = vor.u32 %v163, %v164
    %v166 = vsub.s32 4294967266, %v161
    %v167 = vadd.s32 %v166, 127
    %v168 = vshll.u32 %v167, 23
    %v169 = vor.u32 4788187, %v168
    %v170 = vand.u32 2147483647, %v169
    %v172 = vcvt.s32.f32 %v165
    %v173 = vmul.f32 %v172, %v170
    %v174 = vxor.u32 %v173, 2147483648
    %v175 = vsel %vm54, %v174, %v173
    %v176 = vsub.s32 4, %v152
    %v177 = vsel %vm54, %v176, %v152
    %v178 = vsel %vm53, %v49, %v175
    %v179 = vsel %vm53, 0, %v177
    %v180 = vmul.f32 %v178, %v178
    %v181 = vmul.f32 %v180, -0.001358992
    %v182 = vadd.f32 %v181, 0.041655596
    %v183 = vmul.f32 %v180, %v182
    %v184 = vadd.f32 %v183, -0.4999988
    %v185 = vmul.f32 %v180, %v184
    %v186 = vadd.f32 1.0, %v185
    %v187 = vmul.f32 %v178, %v178
    %v188 = vmul.f32 %v187, -0.00019511016
    %v189 = vadd.f32 %v188, 0.008332121
    %v190 = vmul.f32 %v187, %v189
    %v191 = vadd.f32 %v190, -0.16666654
    %v192 = vmul.f32 %v187, %v191
    %v193 = vadd.f32 %v192, 1.0
    %v194 = vmul.f32 %v193, %v178
    %vm195 = vweird.f32 %v49
    %v196 = vand.u32 %v179, 3
    %vm197 = vcmp.lt.s32.totalorder %v196, 2
    %vm198 = vcmp.eq.s32.totalorder %v196, 0
    %v199 = vxor.u32 %v194, 2147483648
    %v200 = vsel %vm198, %v186, %v199
    %vm201 = vcmp.eq.s32.totalorder %v196, 2
    %v202 = vxor.u32 %v186, 2147483648
    %v203 = vsel %vm201, %v202, %v194
    %v204 = vsel %vm197, %v200, %v203
    %v205 = vsel %vm195, nan, %v204
    %v206 = vand.u32 2147483647, %v49
    %vm207 = vcmp.le.f32.partialorder %v206, 0.7853982
    %vm208 = vcmp.lt.s32.totalorder %v49, 0
    %v209 = vand.u32 %v49, 2139095040
    %v210 = vshrl.u32 %v209, 23
    %v211 = vsub.s32 %v210, 127
    %v212 = vand.u32 2147483647, %v49
    %v213 = vand.u32 %v212, 8388607
    %v214 = vor.u32 %v213, 8388608
    %v215 = vsub.s32 0, %v214
    %v216 = vadd.s32 %v211, 1
    %vm217 = vcmp.gt.s32.totalorder %v216, 0
    %v218 = vsel %vm217, %v216, 0
    %v219 = vshrl.u32 %v218, 5
    %v220 = vand.u32 %v218, 31
    %v221 = vsub.s32 32, %v220
    %v222 = vshrl.u32 683565275, %v221
    %v223 = vshll.u32 683565275, %v220
    %v224 = vshrl.u32 2475754826, %v221
    %v225 = vor.u32 %v223, %v224
    %v226 = vshll.u32 2475754826, %v220
    %v227 = vshrl.u32 2131351028, %v221
    %v228 = vor.u32 %v226, %v227
    %v229 = vshll.u32 2131351028, %v220
    %v230 = vshrl.u32 2102212464, %v221
    %v231 = vor.u32 %v229, %v230
    %v232 = vshll.u32 2102212464, %v220
    %v233 = vshrl.u32 920167782, %v221
    %v234 = vor.u32 %v232, %v233
    %v235 = vshll.u32 920167782, %v220
    %v236 = vshrl.u32 1326507024, %v221
    %v237 = vor.u32 %v235, %v236
    %vm238 = vcmp.lt.s32.totalorder %v219, 1
    %vm239 = vcmp.lt.s32.totalorder %v219, 2
    %vm240 = vcmp.lt.s32.totalorder %v219, 3
    %vm241 = vcmp.lt.s32.totalorder %v219, 4
    %v242 = vsel %vm238, %v222, %v225
    %v243 = vsel %vm241, %v231, 2102212464
    %v244 = vsel %vm240, %v228, %v243
    %v245 = vsel %vm239, %v242, %v244
    %v246 = vsel %vm238, %v225, %v228
    %v247 = vsel %vm241, %v234, 920167782
    %v248 = vsel %vm240, %v231, %v247
    %v249 = vsel %vm239, %v246, %v248
    %v250 = vsel %vm238, %v228, %v231
    %v251 = vsel %vm241, %v237, 1326507024
    %v252 = vsel %vm240, %v234, %v251
    %v253 = vsel %vm239, %v250, %v252
    %v254 = vshll.u32 %v214, 8
    %v255 = vand.u32 %v254, 65535
    %v256 = vshrl.u32 %v254, 16
    %v257 = vand.u32 %v253, 65535
    %v258 = vshrl.u32 %v253, 16
    %v259 = vmul.u32 %v255, %v257
    %v260 = vmul.u32 %v255, %v258
    %v261 = vmul.u32 %v256, %v257
    %v262 = vmul.u32 %v256, %v258
    %v263 = vshll.u32 %v260, 16
    %v264 = vshrl.u32 %v260, 16
    %v265 = vshll.u32 %v261, 16
    %v266 = vshrl.u32 %v261, 16
    %vm267 = vc.u32 %v259, %v263
    %v268 = vsel %vm267, 1, 0
    %v269 = vadd.s32 %v259, %v263
    %v270 = vadd.s32 %v262, %v268
    %vm271 = vc.u32 %v269, %v265
    %v272 = vsel %vm271, 1, 0
    %v273 = vadd.s32 %v269, %v265
    %v274 = vadd.s32 %v270, %v272
    %v275 = vadd.s32 %v274, %v264
    %v276 = vadd.s32 %v275, %v266
    %v277 = vand.u32 %v254, 65535
    %v278 = vshrl.u32 %v254, 16
    %v279 = vand.u32 %v249, 65535
    %v280 = vshrl.u32 %v249, 16
    %v281 = vmul.u32 %v277, %v279
    %v282 = vmul.u32 %v277, %v280
    %v283 = vmul.u32 %v278, %v279
    %v284 = vmul.u32 %v278, %v280
    %v285 = vshll.u32 %v282, 16
    %v286 = vshrl.u32 %v282, 16
    %v287 = vshll.u32 %v283, 16
    %v288 = vshrl.u32 %v283, 16
    %vm289 = vc.u32 %v281, %v285
    %v290 = vsel %vm289, 1, 0
    %v291 = vadd.s32 %v281, %v285
    %v292 = vadd.s32 %v284, %v290
    %vm293 = vc.u32 %v291, %v287
    %v294 = vsel %vm293, 1, 0
    %v295 = vadd.s32 %v291, %v287
    %v296 = vadd.s32 %v292, %v294
    %v297 = vadd.s32 %v296, %v286
    %v298 = vadd.s32 %v297, %v288
    %v299 = vmul.u32 %v254, %v245
    %v300 = vadd.s32 %v276, %v295
    %vm301 = vc.u32 %v276, %v295
    %v302 = vadd.s32 %v298, 1
    %v303 = vsel %vm301, %v302, %v298
    %v304 = vadd.s32 %v299, %v303
    %v305 = vadd.s32 %v304, 536870912
    %v306 = vshrl.u32 %v305, 30
    %v307 = vshll.u32 %v306, 30
    %v308 = vsub.s32 %v304, %v307
    %vm309 = vcmp.lt.s32.totalorder %v308, 0
    %v310 = vsub.s32 0, %v308
    %v311 = vsel %vm309, %v310, %v308
    %v312 = vclz %v311
    %v313 = vsub.s32 %v312, 2
    %vm314 = vcmp.gt.s32.totalorder 0, %v313
    %v315 = vsel %vm314, 0, %v313
    %v316 = vsub.s32 32, %v315
    %v317 = vshll.u32 %v308, %v315
    %v318 = vshrl.u32 %v300, %v316
    %v319 = vor.u32 %v317, %v318
    %v320 = vsub.s32 4294967266, %v315
    %v321 = vadd.s32 %v320, 127
    %v322 = vshll.u32 %v321, 23
    %v323 = vor.u32 4788187, %v322
    %v324 = vand.u32 2147483647, %v323
    %v326 = vcvt.s32.f32 %v319
    %v327 = vmul.f32 %v326, %v324
    %v328 = vxor.u32 %v327, 2147483648
    %v329 = vsel %vm208, %v328, %v327
    %v330 = vsub.s32 4, %v306
    %v331 = vsel %vm208, %v330, %v306
    %v332 = vsel %vm207, %v49, %v329
    %v333 = vsel %vm207, 0, %v331
    %v334 = vmul.f32 %v332, %v332
    %v335 = vmul.f32 %v334, -0.001358992
    %v336 = vadd.f32 %v335, 0.041655596
    %v337 = vmul.f32 %v334, %v336
    %v338 = vadd.f32 %v337, -0.4999988
    %v339 = vmul.f32 %v334, %v338
    %v340 = vadd.f32 1.0, %v339
    %v341 = vmul.f32 %v332, %v332
    %v342 = vmul.f32 %v341, -0.00019511016
    %v343 = vadd.f32 %v342, 0.008332121
    %v344 = vmul.f32 %v341, %v343
    %v345 = vadd.f32 %v344, -0.16666654
    %v346 = vmul.f32 %v341, %v345
    %v347 = vadd.f32 %v346, 1.0
    %v348 = vmul.f32 %v347, %v332
    %vm349 = vweird.f32 %v49
    %v350 = vadd.s32 %v333, 3
    %v351 = vand.u32 %v350, 3
    %vm352 = vcmp.lt.s32.totalorder %v351, 2
    %vm353 = vcmp.eq.s32.totalorder %v351, 0
    %v354 = vxor.u32 %v348, 2147483648
    %v355 = vsel %vm353, %v340, %v354
    %vm356 = vcmp.eq.s32.totalorder %v351, 2
    %v357 = vxor.u32 %v340, 2147483648
    %v358 = vsel %vm356, %v357, %v348
    %v359 = vsel %vm352, %v355, %v358
    %v360 = vsel %vm349, nan, %v359
    %v361 = vsel %vm51, %v205, %v360
    %v362 = vld [vmem:[#allocation5] sm:$0xf]
    %v363 = vadd.f32 %v362, %v361
    %v364 = vlaneseq
    %v365 = vshrl.u32 %v364, 7
    %v366 = vstv 0
    %v367 = vadd.s32 %v365, %v366
    %v368 = vlaneseq
    %v369 = vand.u32 %v368, 127
    %v370 = vadd.s32 %v369, 128
    %v371 = vadd.s32 %v369, 256
    %v372 = vadd.s32 %v369, 384
    %v373 = vmul.u32 %v367, 512
    %v374 = vadd.s32 %v373, %v369
    %v375 = vadd.s32 %v373, %v370
    %v376 = vadd.s32 %v373, %v371
    %v377 = vadd.s32 %v373, %v372
    %s378 = sld [smem:[#allocation3]]
    %s379 = smul.u32 %s378, 2654435769
    %v380 = vstv %s379
    %v381 = vxor.u32 %v374, %v380
    %v382 = vxor.u32 %v375, %v380
    %v383 = vxor.u32 %v376, %v380
    %v384 = vxor.u32 %v377, %v380
    %v385 = vshrl.u32 %v381, 16
    %v386 = vshrl.u32 %v382, 16
    %v387 = vshrl.u32 %v383, 16
    %v388 = vshrl.u32 %v384, 16
    %v389 = vxor.u32 %v381, %v385
    %v390 = vxor.u32 %v382, %v386
    %v391 = vxor.u32 %v383, %v387
    %v392 = vxor.u32 %v384, %v388
    %v393 = vmul.u32 %v389, 2246822507
    %v394 = vmul.u32 %v390, 2246822507
    %v395 = vmul.u32 %v391, 2246822507
    %v396 = vmul.u32 %v392, 2246822507
    %v397 = vshrl.u32 %v393, 13
    %v398 = vshrl.u32 %v394, 13
    %v399 = vshrl.u32 %v395, 13
    %v400 = vshrl.u32 %v396, 13
    %v401 = vxor.u32 %v393, %v397
    %v402 = vxor.u32 %v394, %v398
    %v403 = vxor.u32 %v395, %v399
    %v404 = vxor.u32 %v396, %v400
    %v405 = vmul.u32 %v401, 3266489909
    %v406 = vmul.u32 %v402, 3266489909
    %v407 = vmul.u32 %v403, 3266489909
    %v408 = vmul.u32 %v404, 3266489909
    %v409 = vshrl.u32 %v405, 16
    %v410 = vshrl.u32 %v406, 16
    %v411 = vshrl.u32 %v407, 16
    %v412 = vshrl.u32 %v408, 16
    %v413 = vxor.u32 %v405, %v409
    %v414 = vxor.u32 %v406, %v410
    %v415 = vxor.u32 %v407, %v411
    %v416 = vxor.u32 %v408, %v412
    %v417 = vand.u32 %v413, 2147483647
    %v418 = vand.u32 %v414, 2147483647
    %v419 = vand.u32 %v415, 2147483647
    %v420 = vand.u32 %v416, 2147483647
    %vm421 = vcmp.ge.s32.totalorder %v417, 214748365
    %vm422 = vcmp.ge.s32.totalorder %v418, 214748365
    %vm423 = vcmp.ge.s32.totalorder %v419, 214748365
    %vm424 = vcmp.ge.s32.totalorder %v420, 214748365
    %v425 = vmul.f32 %v363, 1.1111112
    %v427 = vperm.slane %v425, 0
    %v428 = vperm.slane %v425, 1
    %v429 = vperm.slane %v425, 2
    %v430 = vperm.slane %v425, 3
    %v435 = vsel %vm421, %v427, 0.0
    %v436 = vsel %vm422, %v428, 0.0
    %v437 = vsel %vm423, %v429, 0.0
    %v438 = vsel %vm424, %v430, 0.0
    %v443 = vrot.slane %v436, 7
    %v444 = vrot.slane %v437, 6
    %v445 = vrot.slane %v438, 5
    %vm446 = vcmask 1040384
    %v447 = vsel %vm446, %v435, %v443
    %vm448 = vcmask 1042434
    %v449 = vsel %vm448, %v444, %v445
    %vm450 = vcmask 1041408
    %v451 = vsel %vm450, %v447, %v449
    %v453 = vlaneseq
    %vm454 = vcmp.ge.s32.totalorder %v453, 0
    %vm455 = vcmp.lt.s32.totalorder %v453, 512
    %vm456 = vmand %vm454, %vm455
    %457 = vst.msk [vmem:[#allocation8] sm:$0xf] %vm456, %v451
    // Predicated region
    $region26: #{tpu_custom_call.1} parent=1 // pred_check
      _
    $region27: #{tpu_custom_call.1} parent=1 // pred_check_branch
      %459 = sbr.rel (0) target = $region29
    $region28: #{tpu_custom_call.1} parent=1 // pred_region
      %461 = vsyncadd [#allocation7], 0
      %s463 = sshll.u32 [#allocation8], 4
      %s464 = int_to_ptr.vmem [resolvable:$true] %s463
      %s465 = sshll.u32 %s6, 4
      %s466 = int_to_ptr.hbm [resolvable:$true] %s465
      %468 = dma.vmem_to_hbm [thread:$0]  %s464, 64, %s466, [#allocation7]
    $region29: #{tpu_custom_call.1} parent=1 // pred_fallthru
      _
    // Predicated region
    $region30: #{tpu_custom_call.1} parent=1 // pred_check
      _
    $region31: #{tpu_custom_call.1} parent=1 // pred_check_branch
      %470 = sbr.rel (0) target = $region33
    $region32: #{tpu_custom_call.1} parent=1 // pred_region
      %472 = dma.done [#allocation7], 64
    $region33: #{tpu_custom_call.1} parent=1 // pred_fallthru
      _
    %473 = vsyncpa [#allocation6], 1
    %474 = vsyncpa [#allocation7], 1

</llo_original>
